<compile_context>
chip_gen: v7x
topology: tpu7x:2x2x1
jax: 0.10.0
libtpu: 0.0.40
codegen_flags: <defaults>
</compile_context>

<pallas_src>
import functools

import jax
import jax.numpy as jnp
import numpy as np
from jax.experimental import pallas as pl
from jax.experimental.pallas import tpu as pltpu


def _round_up(x, m):
    return ((x + m - 1) // m) * m


def _vmem_capacity_bytes():
    """Physical VMEM of the current chip; conservative fallback if unqueryable."""
    try:
        return int(pltpu.get_tpu_info().vmem_capacity_bytes)
    except Exception:
        return 64 * 1024 * 1024  # v7x per-TC physical VMEM (smallest generation)


# ---------------------------------------------------------------------------
# Pallas kernel: Y[b, :, p_tile] = W @ X[b, :, p_tile] + bias
# ---------------------------------------------------------------------------
def _conv1x1_kernel(x_ref, w_ref, b_ref, o_ref):
    # x_ref: (1, K, TP)   w_ref: (N, K)   b_ref: (N, 1)   o_ref: (1, N, TP)
    acc = jnp.dot(w_ref[...], x_ref[0], preferred_element_type=jnp.float32)
    o_ref[0] = (acc + b_ref[...]).astype(o_ref.dtype)


def conv1x1_nchw_pallas(px_z, weight, bias, *, max_tile_p=8192):
    """1x1 convolution applied directly to an NCHW tensor.

    px_z:   (B, K, S, S) float32
    weight: (N, K) float32   (torch Conv2d weight with the 1x1 kernel squeezed)
    bias:   (N,)   float32
    returns (B, N, S, S) float32  (NCHW conv output, no transposes involved)
    """
    B, K, Sh, Sw = px_z.shape
    N = weight.shape[0]
    P = Sh * Sw

    # Free reshape: channels on the sublane axis, pixels on the lane axis.
    x = px_z.reshape(B, K, P)

    # ---- tile selection (lane-aligned, generation-aware, no padding) ----
    max_tile_p = _round_up(max_tile_p, 128)
    tile_p = min(_round_up(P, 128), max_tile_p)

    # Keep double-buffered in+out blocks under 1/4 of physical VMEM.
    vmem_cap = _vmem_capacity_bytes()
    bytes_per_lane = 2 * (K + N) * 4  # x + y blocks, double-buffered, f32
    lane_cap = max(128, (vmem_cap // 4 // bytes_per_lane) // 128 * 128)
    tile_p = min(tile_p, lane_cap)

    # Megacore (v7x has 2 TensorCores): guarantee >= 2 "parallel" grid steps.
    if B * pl.cdiv(P, tile_p) < 2 and P > 128:
        tile_p = max(128, _round_up((P + 1) // 2, 128))

    grid = (B, pl.cdiv(P, tile_p))

    # Explicit scoped-VMEM limit: generous headroom, but never above half of
    # physical VMEM (keeps v5e's 16 MiB default and v7x's 64 MiB physical safe).
    block_bytes = 2 * (K + N) * tile_p * 4
    vmem_limit = int(min(vmem_cap // 2, max(2 * block_bytes + (8 << 20), 16 << 20)))

    cost = pl.CostEstimate(
        flops=2 * B * N * K * P,
        transcendentals=0,
        bytes_accessed=(K + N) * B * P * 4 + N * K * 4 + N * 4,
    )

    bias2d = bias.reshape(N, 1)

    y = pl.pallas_call(
        _conv1x1_kernel,
        out_shape=jax.ShapeDtypeStruct((B, N, P), jnp.float32),
        grid_spec=pltpu.PrefetchScalarGridSpec(
            num_scalar_prefetch=0,
            grid=grid,
            in_specs=[
                pl.BlockSpec((1, K, tile_p), lambda b, p: (b, 0, p)),
                pl.BlockSpec((N, K), lambda b, p: (0, 0)),
                pl.BlockSpec((N, 1), lambda b, p: (0, 0)),
            ],
            out_specs=pl.BlockSpec((1, N, tile_p), lambda b, p: (b, 0, p)),
        ),
        compiler_params=pltpu.CompilerParams(
            dimension_semantics=("parallel", "parallel"),
            vmem_limit_bytes=vmem_limit,
        ),
        cost_estimate=cost,
    )(x, weight, bias2d)

    return y.reshape(B, N, Sh, Sw)


# ---------------------------------------------------------------------------
# DiscretizedMixture forward (Pallas-backed) + mixture-parameter helpers
# ---------------------------------------------------------------------------
class HParams:
    def __init__(self, width, image_channels, num_mixtures, image_size):
        self.width = width
        self.image_channels = image_channels
        self.num_mixtures = num_mixtures
        self.image_size = image_size


def init_params(H, key):
    """Deterministic Conv2d(1x1) init matching nn.Conv2d defaults (bias zeroed).

    Weight kept in torch layout (out_ch, in_ch) — exactly the kernel's LHS.
    """
    out_ch = H.image_channels * H.num_mixtures * 3
    bound = 1.0 / np.sqrt(H.width)  # fan_in = in_ch * 1 * 1
    w = jax.random.uniform(
        key, (out_ch, H.width), minval=-bound, maxval=bound, dtype=jnp.float32
    )
    b = jnp.zeros((out_ch,), dtype=jnp.float32)  # zero_bias=True
    return w, b


def discretized_mixture_forward(px_z, weight, bias, H):
    """Replicates DiscretizedMixture.forward exactly.

    px_z: (B, width, S, S) NCHW float32.
    returns: (B, num_mixtures*3, S, S, image_channels) float32.
    """
    B, C, S, _ = px_z.shape
    assert C == H.width and S == H.image_size

    xhat = conv1x1_nchw_pallas(px_z, weight, bias)  # (B, 3*nm*ic, S, S)
    # torch: reshape(B, 3*nm, ic, S, S).permute(0, 1, 3, 4, 2)
    xhat = xhat.reshape(B, H.num_mixtures * 3, H.image_channels, S, S)
    return jnp.transpose(xhat, (0, 1, 3, 4, 2))


def get_mixture_params(coeffs):
    """JAX port of get_mixture_params (coeffs axis=1 has size 3*n_mix)."""
    ch = coeffs.shape[1]
    n_mix = ch // 3
    pi_logits = jnp.transpose(coeffs[:, :n_mix], (0, 2, 3, 4, 1))
    means = jnp.transpose(coeffs[:, n_mix:2 * n_mix], (0, 2, 3, 4, 1))
    logsigmas = jnp.transpose(coeffs[:, 2 * n_mix:], (0, 2, 3, 4, 1))
    sigmas = jnp.exp(jnp.tanh(logsigmas / 8.0) * 8.0)
    return pi_logits, means, sigmas


def forward_mixture_params(px_z, weight, bias, H):
    """Fused forward + get_mixture_params: a SINGLE relayout from the NCHW
    kernel output to the (B, S, S, ic, nm) heads, instead of forward's permute
    followed by three per-head permutes.  Numerically identical to
    get_mixture_params(discretized_mixture_forward(...))."""
    B = px_z.shape[0]
    S = H.image_size
    nm, ic = H.num_mixtures, H.image_channels

    xhat = conv1x1_nchw_pallas(px_z, weight, bias)       # (B, 3*nm*ic, S, S)
    x6 = xhat.reshape(B, 3, nm, ic, S, S)                # free reshape
    heads = jnp.transpose(x6, (1, 0, 4, 5, 3, 2))        # one transpose total
    pi_logits, means, logsigmas = heads[0], heads[1], heads[2]
    sigmas = jnp.exp(jnp.tanh(logsigmas / 8.0) * 8.0)
    return pi_logits, means, sigmas


# TODO(synk): get_component_distributions / nll / sample depend on an abstract
# torch.distributions subclass (NotImplementedError in the module) and are not
# part of the forward hot path, so they are not translated here.


def _reference_forward(px_z, weight, bias, H):
    """Pure-XLA reference: 1x1 conv as einsum + the same reshape/permute."""
    B = px_z.shape[0]
    S = H.image_size
    ref_nchw = jnp.einsum("nk,bkhw->bnhw", weight, px_z) + bias[None, :, None, None]
    ref = ref_nchw.reshape(B, H.num_mixtures * 3, H.image_channels, S, S)
    return jnp.transpose(ref, (0, 1, 3, 4, 2))


if __name__ == "__main__":
    # Small deterministic shapes consistent with the module.
    H = HParams(width=32, image_channels=3, num_mixtures=4, image_size=16)
    B = 2

    key = jax.random.PRNGKey(0)
    k_x, k_w, k_x2, k_x3 = jax.random.split(key, 4)
    px_z = jax.random.normal(k_x, (B, H.width, H.image_size, H.image_size), jnp.float32)
    weight, bias = init_params(H, k_w)

    fwd = jax.jit(functools.partial(discretized_mixture_forward, H=H))
    xhat = jax.block_until_ready(fwd(px_z, weight, bias))

    assert xhat.shape == (B, H.num_mixtures * 3, H.image_size, H.image_size, H.image_channels)
    ref = _reference_forward(px_z, weight, bias, H)
    np.testing.assert_allclose(np.asarray(xhat), np.asarray(ref), rtol=1e-5, atol=1e-5)

    # Fused single-transpose mixture-params path matches the two-step reference.
    fused = jax.jit(functools.partial(forward_mixture_params, H=H))
    pi_f, mu_f, sig_f = jax.block_until_ready(fused(px_z, weight, bias))
    pi_r, mu_r, sig_r = get_mixture_params(xhat)
    assert pi_f.shape == (B, H.image_size, H.image_size, H.image_channels, H.num_mixtures)
    np.testing.assert_allclose(np.asarray(pi_f), np.asarray(pi_r), rtol=1e-5, atol=1e-5)
    np.testing.assert_allclose(np.asarray(mu_f), np.asarray(mu_r), rtol=1e-5, atol=1e-5)
    np.testing.assert_allclose(np.asarray(sig_f), np.asarray(sig_r), rtol=1e-5, atol=1e-5)

    # Shape-generality: S*S=100 (not a 128 multiple) exercises the ragged
    # masked-store tile path (no jnp.pad / output slice anymore).
    H2 = HParams(width=32, image_channels=3, num_mixtures=4, image_size=10)
    px_z2 = jax.random.normal(k_x2, (B, H2.width, H2.image_size, H2.image_size), jnp.float32)
    fwd2 = jax.jit(functools.partial(discretized_mixture_forward, H=H2))
    xhat2 = jax.block_until_ready(fwd2(px_z2, weight, bias))
    ref2 = _reference_forward(px_z2, weight, bias, H2)
    np.testing.assert_allclose(np.asarray(xhat2), np.asarray(ref2), rtol=1e-5, atol=1e-5)

    # B=1 exercises the megacore split path (pixel axis halved to get 2 steps).
    px_z3 = jax.random.normal(k_x3, (1, H.width, H.image_size, H.image_size), jnp.float32)
    xhat3 = jax.block_until_ready(fwd(px_z3, weight, bias))
    ref3 = _reference_forward(px_z3, weight, bias, H)
    np.testing.assert_allclose(np.asarray(xhat3), np.asarray(ref3), rtol=1e-5, atol=1e-5)

    print("KERNEL_OK")
</pallas_src>

<mosaic_0001>
module attributes {stable_mosaic.version = 11 : i64} {
  func.func @_conv1x1_kernel(%arg0: i32, %arg1: i32, %arg2: memref<1x32x256xf32, #tpu.memory_space<vmem>>, %arg3: memref<36x32xf32, #tpu.memory_space<vmem>>, %arg4: memref<36x1xf32, #tpu.memory_space<vmem>>, %arg5: memref<1x36x256xf32, #tpu.memory_space<vmem>>) attributes {dimension_semantics = [#tpu.dimension_semantics<parallel>, #tpu.dimension_semantics<parallel>], iteration_bounds = array<i64: 2, 1>, scalar_prefetch = 0 : i64, scratch_operands = 0 : i64, tpu.core_type = #tpu.core_type<tc>, window_params = [{transform_indices = @transform_0, window_bounds = array<i64: 1, 32, 256>}, {pipeline_mode = #tpu.pipeline_mode<synchronous>, transform_indices = @transform_1, window_bounds = array<i64: 36, 32>}, {pipeline_mode = #tpu.pipeline_mode<synchronous>, transform_indices = @transform_2, window_bounds = array<i64: 36, 1>}, {transform_indices = @transform_3, window_bounds = array<i64: 1, 36, 256>}]} {
    %c0 = arith.constant 0 : index
    %c0_0 = arith.constant 0 : index
    %0 = vector.load %arg3[%c0, %c0_0] : memref<36x32xf32, #tpu.memory_space<vmem>>, vector<36x32xf32>
    %c0_1 = arith.constant 0 : index
    %c0_2 = arith.constant 0 : index
    %c0_3 = arith.constant 0 : index
    %1 = vector.load %arg2[%c0_1, %c0_2, %c0_3] : memref<1x32x256xf32, #tpu.memory_space<vmem>>, vector<1x32x256xf32>
    %2 = vector.shape_cast %1 : vector<1x32x256xf32> to vector<32x256xf32>
    %cst = arith.constant dense<0.000000e+00> : vector<36x256xf32>
    %3 = tpu.matmul %0, %2, %cst {dimension_numbers = #tpu.dot_dimension_numbers<[1], [0], [0], [1], [0, 0, 1, 1], [], []>} : vector<36x32xf32>, vector<32x256xf32>, vector<36x256xf32> -> vector<36x256xf32>
    %c0_4 = arith.constant 0 : index
    %c0_5 = arith.constant 0 : index
    %4 = vector.load %arg4[%c0_4, %c0_5] : memref<36x1xf32, #tpu.memory_space<vmem>>, vector<36x1xf32>
    %5 = vector.broadcast %4 : vector<36x1xf32> to vector<36x256xf32>
    %6 = arith.addf %3, %5 : vector<36x256xf32>
    %c0_6 = arith.constant 0 : index
    %c0_7 = arith.constant 0 : index
    %c0_8 = arith.constant 0 : index
    %7 = vector.load %arg5[%c0_6, %c0_7, %c0_8] : memref<1x36x256xf32, #tpu.memory_space<vmem>>, vector<1x36x256xf32>
    %8 = vector.shape_cast %7 : vector<1x36x256xf32> to vector<36x256xf32>
    %9 = vector.shape_cast %6 : vector<36x256xf32> to vector<1x36x256xf32>
    tpu.vector_store %arg5[%c0_6, %c0_7, %c0_8], %9 {strides = array<i32>} : memref<1x36x256xf32, #tpu.memory_space<vmem>>, vector<1x36x256xf32>,
    return
  }
  func.func @transform_0(%arg0: i32, %arg1: i32) -> (i32, i32, i32) {
    %c0_i32 = arith.constant 0 : i32
    %c0_i32_0 = arith.constant 0 : i32
    return %arg0, %c0_i32, %arg1 : i32, i32, i32
  }
  func.func @transform_1(%arg0: i32, %arg1: i32) -> (i32, i32) {
    %c0_i32 = arith.constant 0 : i32
    %c0_i32_0 = arith.constant 0 : i32
    %c0_i32_1 = arith.constant 0 : i32
    return %c0_i32, %c0_i32_0 : i32, i32
  }
  func.func @transform_2(%arg0: i32, %arg1: i32) -> (i32, i32) {
    %c0_i32 = arith.constant 0 : i32
    %c0_i32_0 = arith.constant 0 : i32
    %c0_i32_1 = arith.constant 0 : i32
    return %c0_i32, %c0_i32_0 : i32, i32
  }
  func.func @transform_3(%arg0: i32, %arg1: i32) -> (i32, i32, i32) {
    %c0_i32 = arith.constant 0 : i32
    %c0_i32_0 = arith.constant 0 : i32
    return %arg0, %c0_i32, %arg1 : i32, i32, i32
  }
}

</mosaic_0001>

<llo_original>
// kernel: discretized_mixture_forward.1
$region0: #{discretized_mixture_forward.1}
  #allocation0 [shape = 'u32[]', space=smem, size = 0x4, offset = 0x4, fixed_abs, tag = 'smem constant byte address 0x4 - core index']
  #allocation1 [shape = 'u32[144,128]{1,0:T(1,128)}', space=vmem, size = 0x12000, scoped, tag = 'internal scratch']
  %s0 = inlined_call_operand.vmem [shape: f32[2,32,256], index: 0, kind: input, shape index: {}]
  %s1 = inlined_call_operand.vmem [shape: f32[36,32], index: 1, kind: input, shape index: {}]
  %s2 = inlined_call_operand.vmem [shape: f32[36,1], index: 2, kind: input, shape index: {}]
  %s3 = inlined_call_operand.vmem [shape: f32[2,36,256], index: 3, kind: output, shape index: {}]
  %s4 = sld [smem:[#allocation0]]
  $region45: #{discretized_mixture_forward.1} parent=0
    _
  %s6 = ssub.s32 1, %s4
  %s7 = scalar_select 0, %s6, %s4
  loop: start=0, step=1, limit=4
  $region2: #{discretized_mixture_forward.1} parent=0 // loop_pre_header
    _
  $region3: #{discretized_mixture_forward.1} parent=0 // loop_header
    %s9 = sphi 0, %s13
    %p10 = scmp.ge.s32.totalorder %s9, 4
    %s16 = sphi 0, %s28
    %s17 = sphi 0, %s24
    %s18 = sphi 0, %s16
    %s19 = sphi 0, %s17
    %s20 = sphi 0, %s18
    %s21 = sphi 0, %s19
    %s33 = sphi 0, %s35
    %s36 = sphi 0, %s33
    %s37 = sphi 0, %s36
    %s53 = sphi 0, %s37
    %s57 = sphi 0, %s57
    %s59 = sphi 0, %s57
    %s60 = sphi 0, %s59
    %s74 = sphi 0, %s60
    %s78 = sphi 0, %s78
    %s80 = sphi 0, %s78
    %s81 = sphi 0, %s80
    %s95 = sphi 0, %s81
    %s103 = sphi 0, %s105
    %s106 = sphi 0, %s103
    %s107 = sphi 0, %s106
    %s123 = sphi 0, %s107
  $region4: #{discretized_mixture_forward.1} parent=0 // loop_header_branch
    %12 = sbr.rel (%p10) target = $region8
  $region5: #{discretized_mixture_forward.1} parent=0 // loop_body
    %s14 = ssub.s32 %s9, 1
    %s15 = ssub.s32 %s9, 2
    %s22 = sadd.s32 1, %s17
    %p23 = scmp.ge.s32.totalorder %s22, 1
    %s24 = scalar_select %p23, 0, %s22
    %s25 = sadd.s32 1, %s16
    %s26 = scalar_select %p23, %s25, %s16
    %p27 = scmp.ge.s32.totalorder %s26, 2
    %s28 = scalar_select %p27, 0, %s26
    %s29 = ssub.s32 %s16, %s28
    %s30 = ssub.s32 %s17, %s24
    %s31 = sor.u32 %s29, %s30
    %p32 = scmp.eq.s32.totalorder %s31, 0
    %s34 = sadd.s32 %s33, 1
    %s35 = scalar_select %p32, %s33, %s34
    %p38 = pneg %p32
    %p39 = scmp.eq.s32.totalorder %s9, 1
    %p40 = por %p38, %p39
    %p41 = scmp.ne.s32.totalorder %s33, %s36
    %p42 = scmp.eq.s32.totalorder %s9, 0
    %p43 = por %p41, %p42
    %p44 = scmp.ne.s32.totalorder %s33, %s36
    %p45 = scmp.eq.s32.totalorder %s14, 1
    %p46 = por %p44, %p45
    %p47 = scmp.ne.s32.totalorder %s36, %s37
    %p48 = scmp.eq.s32.totalorder %s14, 0
    %p49 = por %p47, %p48
    %p50 = scmp.ne.s32.totalorder %s36, %s37
    %p51 = scmp.eq.s32.totalorder %s15, 1
    %p52 = por %p50, %p51
    %p54 = scmp.ne.s32.totalorder %s37, %s53
    %p55 = scmp.eq.s32.totalorder %s15, 0
    %p56 = por %p54, %p55
    %s58 = sadd.s32 %s57, 1
    %p61 = scmp.eq.s32.totalorder %s9, 1
    %p62 = scmp.ne.s32.totalorder %s57, %s59
    %p63 = scmp.eq.s32.totalorder %s9, 0
    %p64 = por %p62, %p63
    %p65 = scmp.ne.s32.totalorder %s57, %s59
    %p66 = scmp.eq.s32.totalorder %s14, 1
    %p67 = por %p65, %p66
    %p68 = scmp.ne.s32.totalorder %s59, %s60
    %p69 = scmp.eq.s32.totalorder %s14, 0
    %p70 = por %p68, %p69
    %p71 = scmp.ne.s32.totalorder %s59, %s60
    %p72 = scmp.eq.s32.totalorder %s15, 1
    %p73 = por %p71, %p72
    %p75 = scmp.ne.s32.totalorder %s60, %s74
    %p76 = scmp.eq.s32.totalorder %s15, 0
    %p77 = por %p75, %p76
    %s79 = sadd.s32 %s78, 1
    %p82 = scmp.eq.s32.totalorder %s9, 1
    %p83 = scmp.ne.s32.totalorder %s78, %s80
    %p84 = scmp.eq.s32.totalorder %s9, 0
    %p85 = por %p83, %p84
    %p86 = scmp.ne.s32.totalorder %s78, %s80
    %p87 = scmp.eq.s32.totalorder %s14, 1
    %p88 = por %p86, %p87
    %p89 = scmp.ne.s32.totalorder %s80, %s81
    %p90 = scmp.eq.s32.totalorder %s14, 0
    %p91 = por %p89, %p90
    %p92 = scmp.ne.s32.totalorder %s80, %s81
    %p93 = scmp.eq.s32.totalorder %s15, 1
    %p94 = por %p92, %p93
    %p96 = scmp.ne.s32.totalorder %s81, %s95
    %p97 = scmp.eq.s32.totalorder %s15, 0
    %p98 = por %p96, %p97
    %s99 = ssub.s32 %s16, %s28
    %s100 = ssub.s32 %s17, %s24
    %s101 = sor.u32 %s99, %s100
    %p102 = scmp.eq.s32.totalorder %s101, 0
    %s104 = sadd.s32 %s103, 1
    %s105 = scalar_select %p102, %s103, %s104
    %p108 = pneg %p102
    %p109 = scmp.eq.s32.totalorder %s9, 1
    %p110 = por %p108, %p109
    %p111 = scmp.ne.s32.totalorder %s103, %s106
    %p112 = scmp.eq.s32.totalorder %s9, 0
    %p113 = por %p111, %p112
    %p114 = scmp.ne.s32.totalorder %s103, %s106
    %p115 = scmp.eq.s32.totalorder %s14, 1
    %p116 = por %p114, %p115
    %p117 = scmp.ne.s32.totalorder %s106, %s107
    %p118 = scmp.eq.s32.totalorder %s14, 0
    %p119 = por %p117, %p118
    %p120 = scmp.ne.s32.totalorder %s106, %s107
    %p121 = scmp.eq.s32.totalorder %s15, 1
    %p122 = por %p120, %p121
    %p124 = scmp.ne.s32.totalorder %s107, %s123
    %p125 = scmp.eq.s32.totalorder %s15, 0
    %p126 = por %p124, %p125
    %p127 = scmp.le.s32.totalorder 1, %s9
    %p128 = scmp.lt.s32.totalorder %s9, 3
    %p129 = pnand %p127, %p128
    %p130 = pneg %p129
    // Predicated region
    $region9: #{discretized_mixture_forward.1} parent=5 // pred_check
      _
    $region10: #{discretized_mixture_forward.1} parent=5 // pred_check_branch
      %132 = sbr.rel (%p129) target = $region12
    $region11: #{discretized_mixture_forward.1} parent=5 // pred_region
      %s133 = ssub.s32 %s9, 1
      // Predicated region
      $region13: #{discretized_mixture_forward.1} parent=11 // pred_check
        %p134 = pneg %p70
      $region14: #{discretized_mixture_forward.1} parent=11 // pred_check_branch
        %136 = sbr.rel (%p134) target = $region16
      $region15: #{discretized_mixture_forward.1} parent=11 // pred_region
        _
      $region16: #{discretized_mixture_forward.1} parent=11 // pred_fallthru
        _
      // Predicated region
      $region17: #{discretized_mixture_forward.1} parent=11 // pred_check
        %p137 = pneg %p91
      $region18: #{discretized_mixture_forward.1} parent=11 // pred_check_branch
        %139 = sbr.rel (%p137) target = $region20
      $region19: #{discretized_mixture_forward.1} parent=11 // pred_region
        _
      $region20: #{discretized_mixture_forward.1} parent=11 // pred_fallthru
        _
    $region12: #{discretized_mixture_forward.1} parent=5 // pred_fallthru
      _
    %p140 = scmp.lt.s32.totalorder %s9, 2
    // Predicated region
    $region21: #{discretized_mixture_forward.1} parent=5 // pred_check
      %p141 = pneg %p140
    $region22: #{discretized_mixture_forward.1} parent=5 // pred_check_branch
      %143 = sbr.rel (%p141) target = $region24
    $region23: #{discretized_mixture_forward.1} parent=5 // pred_region
      // Predicated region
      $region25: #{discretized_mixture_forward.1} parent=23 // pred_check
        %p144 = pneg %p43
      $region26: #{discretized_mixture_forward.1} parent=23 // pred_check_branch
        %146 = sbr.rel (%p144) target = $region28
      $region27: #{discretized_mixture_forward.1} parent=23 // pred_region
        %s147 = smul.u32 2, %s17
        %p148 = scmp.lt.s32.totalorder %s16, 1
        %s149 = scalar_select %p148, %s16, 1
        %p150 = scmp.lt.s32.totalorder %s147, 1
        %s151 = scalar_select %p150, %s147, 1
        %s152 = smul.addr %s149, 8
        %s153 = sadd.s32 %s151, %s152
        %s154 = smul.addr %s153, 8
        %s155 = scalar_lea.vmem %s0, %s154
        %s156 = smul.u32 2, %s17
      $region28: #{discretized_mixture_forward.1} parent=23 // pred_fallthru
        _
    $region24: #{discretized_mixture_forward.1} parent=5 // pred_fallthru
      _
    %p157 = scmp.le.s32.totalorder 1, %s9
    %p158 = scmp.lt.s32.totalorder %s9, 3
    %p159 = pnand %p157, %p158
    %p160 = pneg %p159
    // Predicated region
    $region29: #{discretized_mixture_forward.1} parent=5 // pred_check
      _
    $region30: #{discretized_mixture_forward.1} parent=5 // pred_check_branch
      %162 = sbr.rel (%p159) target = $region32
    $region31: #{discretized_mixture_forward.1} parent=5 // pred_region
      %s163 = ssub.s32 %s9, 1
      %s164 = smul.u32 2, %s19
      %p165 = scmp.lt.s32.totalorder %s18, 1
      %s166 = scalar_select %p165, %s18, 1
      %p167 = scmp.lt.s32.totalorder %s164, 1
      %s168 = scalar_select %p167, %s164, 1
      %s169 = smul.addr %s166, 8
      %s170 = sadd.s32 %s168, %s169
      %s171 = smul.addr %s170, 8
      %s172 = scalar_lea.vmem %s0, %s171
      %p173 = pneg %p49
      %p174 = pneg %p46
      %p175 = pneg %p70
      %p176 = pneg %p67
      %p177 = pneg %p91
      %p178 = pneg %p88
      %p179 = pneg %p119
      %p180 = pneg %p116
      %s181 = smul.u32 2, %s19
      %p182 = scmp.lt.s32.totalorder %s18, 1
      %s183 = scalar_select %p182, %s18, 1
      %p184 = scmp.lt.s32.totalorder %s181, 1
      %s185 = scalar_select %p184, %s181, 1
      %s186 = smul.addr %s183, 10
      %s187 = sadd.s32 %s185, %s186
      %s188 = smul.addr %s187, 8
      %s189 = scalar_lea.vmem %s3, %s188
      %s190 = smul.u32 2, %s19
      %p191 = scmp.lt.s32.totalorder %s18, 1
      %s192 = scalar_select %p191, %s18, 1
      %p193 = scmp.lt.s32.totalorder %s190, 1
      %s194 = scalar_select %p193, %s190, 1
      %s195 = smul.addr %s192, 8
      %s196 = sadd.s32 %s194, %s195
      %s197 = smul.addr %s196, 8
      %s198 = scalar_lea.vmem %s0, %s197
      %s199 = smul.u32 2, %s19
      %s200 = smul.u32 2, %s19
      %p201 = scmp.lt.s32.totalorder %s18, 1
      %s202 = scalar_select %p201, %s18, 1
      %p203 = scmp.lt.s32.totalorder %s200, 1
      %s204 = scalar_select %p203, %s200, 1
      %s205 = smul.addr %s202, 10
      %s206 = sadd.s32 %s204, %s205
      %s207 = smul.addr %s206, 8
      %s208 = scalar_lea.vmem %s3, %s207
      %s209 = smul.u32 2, %s19
      %v210 = vld [vmem:[%s1] sm:$0xff]
      %v211 = vld [vmem:[%s1 + $0x8] sm:$0xff]
      %v212 = vld [vmem:[%s1 + $0x10] sm:$0xff]
      %v213 = vld [vmem:[%s1 + $0x18] sm:$0xff]
      %v214 = vld [vmem:[%s1 + $0x20] sm:$0xf]
      %v215 = vld [vmem:[%s198] sm:$0xff]
      %v216 = vld [vmem:[%s198 + $0x8] sm:$0xff]
      %v217 = vld [vmem:[%s198 + $0x10] sm:$0xff]
      %v218 = vld [vmem:[%s198 + $0x18] sm:$0xff]
      %v219 = vld [vmem:[%s198 + $0x20] sm:$0xff]
      %v220 = vld [vmem:[%s198 + $0x28] sm:$0xff]
      %v221 = vld [vmem:[%s198 + $0x30] sm:$0xff]
      %v222 = vld [vmem:[%s198 + $0x38] sm:$0xff]
      %v223 = vld [vmem:[%s2] sm:$0xff]
      %v224 = vld [vmem:[%s2 + $0x8] sm:$0xff]
      %v225 = vld [vmem:[%s2 + $0x10] sm:$0xff]
      %v226 = vld [vmem:[%s2 + $0x18] sm:$0xff]
      %v227 = vld [vmem:[%s2 + $0x20] sm:$0xf]
      %229 = vset.pattern.permute.xlu0 0
      %230 = vperm.xlu0 %229, %v223
      %v231 = vpop.permute.xlu0 %230
      %234 = vset.pattern.permute.xlu0 0
      %235 = vperm.xlu0 %234, %v224
      %v236 = vpop.permute.xlu0 %235
      %239 = vset.pattern.permute.xlu0 0
      %240 = vperm.xlu0 %239, %v225
      %v241 = vpop.permute.xlu0 %240
      %244 = vset.pattern.permute.xlu0 0
      %245 = vperm.xlu0 %244, %v226
      %v246 = vpop.permute.xlu0 %245
      %249 = vset.pattern.permute.xlu0 0
      %250 = vperm.xlu0 %249, %v227
      %v251 = vpop.permute.xlu0 %250
      %vm253 = vcmask 261120
      %v255 = vsel %vm253, %v210, 0
      %v258 = vsel %vm253, %v211, 0
      %v261 = vsel %vm253, %v212, 0
      %v264 = vsel %vm253, %v213, 0
      %v267 = vsel %vm253, %v214, 0
      %269 = vmatprep.subr.mxu0 %v216
      %270 = vmatpush1.msra.mxu0 %v215
      %271 = vmatprep.subr.mxu0 %v218
      %272 = vmatpush1.msra.mxu0 %v217
      %273 = vmatprep.subr.mxu0 %v220
      %274 = vmatpush1.msra.mxu0 %v219
      %275 = vmatprep.subr.mxu0 %v222
      %276 = vmatpush1.msra.mxu0 %v221
      %277 = vmatprep.subr.mxu0 0.0
      %278 = vmatpush1.msra.mxu0 0.0
      %279 = vmatprep.subr.mxu0 0.0
      %280 = vmatpush1.msra.mxu0 0.0
      %281 = vmatprep.subr.mxu0 0.0
      %282 = vmatpush1.msra.mxu0 0.0
      %283 = vmatprep.subr.mxu0 0.0
      %284 = vmatpush1.msra.mxu0 0.0
      %285 = vmatprep.subr.mxu0 0.0
      %286 = vmatpush1.msra.mxu0 0.0
      %287 = vmatprep.subr.mxu0 0.0
      %288 = vmatpush1.msra.mxu0 0.0
      %289 = vmatprep.subr.mxu0 0.0
      %290 = vmatpush1.msra.mxu0 0.0
      %291 = vmatprep.subr.mxu0 0.0
      %292 = vmatpush1.msra.mxu0 0.0
      %293 = vmatprep.subr.mxu0 0.0
      %294 = vmatpush1.msra.mxu0 0.0
      %295 = vmatprep.subr.mxu0 0.0
      %296 = vmatpush1.msra.mxu0 0.0
      %297 = vmatprep.subr.mxu0 0.0
      %298 = vmatpush1.msra.mxu0 0.0
      %299 = vmatprep.subr.mxu0 0.0
      %300 = vmatpush1.msra.mxu0 0.0
      %301 = vmatprep.subr.mxu0 0.0
      %302 = vmatpush1.msra.mxu0 0.0
      %303 = vmatprep.subr.mxu0 0.0
      %304 = vmatpush1.msra.mxu0 0.0
      %305 = vmatprep.subr.mxu0 0.0
      %306 = vmatpush1.msra.mxu0 0.0
      %307 = vmatprep.subr.mxu0 0.0
      %308 = vmatpush1.msra.mxu0 0.0
      %309 = vmatprep.subr.mxu0 0.0
      %310 = vmatpush1.msra.mxu0 0.0
      %311 = vmatprep.subr.mxu0 0.0
      %312 = vmatpush1.msra.mxu0 0.0
      %313 = vmatprep.subr.mxu0 0.0
      %314 = vmatpush1.msra.mxu0 0.0
      %315 = vmatprep.subr.mxu0 0.0
      %316 = vmatpush1.msra.mxu0 0.0
      %317 = vmatprep.subr.mxu0 0.0
      %318 = vmatpush1.msra.mxu0 0.0
      %319 = vmatprep.subr.mxu0 0.0
      %320 = vmatpush1.msra.mxu0 0.0
      %321 = vmatprep.subr.mxu0 0.0
      %322 = vmatpush1.msra.mxu0 0.0
      %323 = vmatprep.subr.mxu0 0.0
      %324 = vmatpush1.msra.mxu0 0.0
      %325 = vmatprep.subr.mxu0 0.0
      %326 = vmatpush1.msra.mxu0 0.0
      %327 = vmatprep.subr.mxu0 0.0
      %328 = vmatpush1.msra.mxu0 0.0
      %329 = vmatprep.subr.mxu0 0.0
      %330 = vmatpush1.msra.mxu0 0.0
      %331 = vmatprep.subr.mxu0 0.0
      %332 = vmatpush1.msra.mxu0 0.0
      %333 = vmatprep.mubr.f32.mxu0 0.0
      %334 = vmatmul.mubr.f32.gmra.mrb[0].mxu0 %v255
      %v335 = vpop.f32.mrb[0].mxu0
      %v336 = vadd.f32 %v231, %v335
      %v337 = vpop.f32.mrb[0].mxu0
      %v338 = vadd.f32 %v231, %v337
      %339 = vmatprep.mubr.f32.mxu0 0.0
      %340 = vmatmul.mubr.f32.gmra.mrb[0].mxu0 %v258
      %v341 = vpop.f32.mrb[0].mxu0
      %v342 = vadd.f32 %v236, %v341
      %v343 = vpop.f32.mrb[0].mxu0
      %v344 = vadd.f32 %v236, %v343
      %345 = vmatprep.mubr.f32.mxu0 0.0
      %346 = vmatmul.mubr.f32.gmra.mrb[0].mxu0 %v261
      %v347 = vpop.f32.mrb[0].mxu0
      %v348 = vadd.f32 %v241, %v347
      %v349 = vpop.f32.mrb[0].mxu0
      %v350 = vadd.f32 %v241, %v349
      %351 = vmatprep.mubr.f32.mxu0 0.0
      %352 = vmatmul.mubr.f32.gmra.mrb[0].mxu0 %v264
      %v353 = vpop.f32.mrb[0].mxu0
      %v354 = vadd.f32 %v246, %v353
      %v355 = vpop.f32.mrb[0].mxu0
      %v356 = vadd.f32 %v246, %v355
      %357 = vmatprep.mubr.f32.mxu0 0.0
      %358 = vmatmul.mubr.f32.gmra.mrb[0].mxu0 %v267
      %v359 = vpop.f32.mrb[0].mxu0
      %v360 = vadd.f32 %v251, %v359
      %v361 = vpop.f32.mrb[0].mxu0
      %v362 = vadd.f32 %v251, %v361
      %363 = vdwg.mxu0
      %364 = vst [vmem:[%s208] sm:$0xff] %v336
      %365 = vst [vmem:[%s208 + $0x8] sm:$0xff] %v338
      %366 = vst [vmem:[%s208 + $0x10] sm:$0xff] %v342
      %367 = vst [vmem:[%s208 + $0x18] sm:$0xff] %v344
      %368 = vst [vmem:[%s208 + $0x20] sm:$0xff] %v348
      %369 = vst [vmem:[%s208 + $0x28] sm:$0xff] %v350
      %370 = vst [vmem:[%s208 + $0x30] sm:$0xff] %v354
      %371 = vst [vmem:[%s208 + $0x38] sm:$0xff] %v356
      %372 = vst [vmem:[%s208 + $0x40] sm:$0xf] %v360
      %373 = vst [vmem:[%s208 + $0x48] sm:$0xf] %v362
      %s374 = smul.u32 2, %s19
      %p375 = scmp.lt.s32.totalorder %s18, 1
      %s376 = scalar_select %p375, %s18, 1
      %p377 = scmp.lt.s32.totalorder %s374, 1
      %s378 = scalar_select %p377, %s374, 1
      %s379 = smul.addr %s376, 10
      %s380 = sadd.s32 %s378, %s379
      %s381 = smul.addr %s380, 8
      %s382 = scalar_lea.vmem %s3, %s381
      // Predicated region
      $region33: #{discretized_mixture_forward.1} parent=31 // pred_check
        %p383 = pneg %p116
      $region34: #{discretized_mixture_forward.1} parent=31 // pred_check_branch
        %385 = sbr.rel (%p383) target = $region36
      $region35: #{discretized_mixture_forward.1} parent=31 // pred_region
        %s386 = smul.u32 2, %s19
      $region36: #{discretized_mixture_forward.1} parent=31 // pred_fallthru
        _
    $region32: #{discretized_mixture_forward.1} parent=5 // pred_fallthru
      _
    %p387 = scmp.le.s32.totalorder 2, %s9
    // Predicated region
    $region37: #{discretized_mixture_forward.1} parent=5 // pred_check
      %p388 = pneg %p387
    $region38: #{discretized_mixture_forward.1} parent=5 // pred_check_branch
      %390 = sbr.rel (%p388) target = $region40
    $region39: #{discretized_mixture_forward.1} parent=5 // pred_region
      %s391 = ssub.s32 %s9, 2
      // Predicated region
      $region41: #{discretized_mixture_forward.1} parent=39 // pred_check
        %p392 = pneg %p122
      $region42: #{discretized_mixture_forward.1} parent=39 // pred_check_branch
        %394 = sbr.rel (%p392) target = $region44
      $region43: #{discretized_mixture_forward.1} parent=39 // pred_region
        %s395 = smul.u32 2, %s21
        %p396 = scmp.lt.s32.totalorder %s20, 1
        %s397 = scalar_select %p396, %s20, 1
        %p398 = scmp.lt.s32.totalorder %s395, 1
        %s399 = scalar_select %p398, %s395, 1
        %s400 = smul.addr %s397, 10
        %s401 = sadd.s32 %s399, %s400
        %s402 = smul.addr %s401, 8
        %s403 = scalar_lea.vmem %s3, %s402
      $region44: #{discretized_mixture_forward.1} parent=39 // pred_fallthru
        _
    $region40: #{discretized_mixture_forward.1} parent=5 // pred_fallthru
      _
  $region6: #{discretized_mixture_forward.1} parent=0 // loop_footer
    %s13 = sadd.s32 1, %s9
  $region7: #{discretized_mixture_forward.1} parent=0 // loop_footer_branch
    %8 = sbr.rel target = $region3
  $region8: #{discretized_mixture_forward.1} parent=0 // loop_exit
    _

</llo_original>
